<compile_context>
chip_gen: v7x
topology: tpu7x:2x2x1
jax: 0.10.0
libtpu: 0.0.40
codegen_flags: <defaults>
</compile_context>

<pallas_src>
import math

import jax
import jax.numpy as jnp
from jax.experimental import pallas as pl
from jax.experimental.pallas import tpu as pltpu


def _round_up(v: int, m: int) -> int:
    return (v + m - 1) // m * m


def hetero_gc_kernel(a_ref, dinv_ref, x_ref, xr_ref, w_ref, b_ref, wr_ref,
                     br_ref, o_ref, acc_ref):
    k = pl.program_id(1)

    @pl.when(k == 0)
    def _():
        acc_ref[...] = jnp.zeros_like(acc_ref)

    # Neighbor-sum chunk: 0/1 int8 adjacency tile -> bf16 (exact values),
    # MXU matmul against the matching bf16 X chunk, f32 accumulation.
    a = a_ref[...].astype(jnp.bfloat16)                          # (tm, tk)
    acc_ref[...] += jnp.dot(a, x_ref[...],
                            preferred_element_type=jnp.float32)  # (tm, f_in)

    @pl.when(k == pl.num_programs(1) - 1)
    def _():
        # Mean reduce: exact f32 per-destination-row 1/in_deg scale
        # (zero for zero-in-degree rows, matching DGL's mean reducer).
        ax = acc_ref[...] * dinv_ref[...]                        # f32
        gcn = jnp.dot(ax.astype(jnp.bfloat16), w_ref[...],
                      preferred_element_type=jnp.float32)
        gcn = jnp.maximum(gcn + b_ref[...], 0.0)                 # bias + relu

        # Residual Linear + relu on this destination-row tile of X.
        res = jnp.dot(xr_ref[...], wr_ref[...],
                      preferred_element_type=jnp.float32)
        gcn = gcn + jnp.maximum(res + br_ref[...], 0.0)

        # dropout(p=0.0) is the identity.
        o_ref[...] = gcn.astype(o_ref.dtype)


def hetero_graph_conv_pallas(adj, x, weight, bias, w_res, b_res, *,
                             tm=128, tk=128):
    """Fused HeteroGraphConv forward.

    adj[d, s] = 1 iff there is an edge s -> d (any numeric dtype, 0/1 values).
    Call under jax.jit so the adjacency pad/cast fuses with the caller.
    """
    n, f_in = x.shape
    f_out = weight.shape[1]
    assert adj.shape == (n, n)
    assert tm % 32 == 0, "tm must be a multiple of 32 (int8 sublane packing)"
    assert tk % 128 == 0, "tk must be a multiple of 128 (lane-dense A tiles)"

    n_pad = _round_up(n, math.lcm(tm, tk))
    f_in_pad = _round_up(f_in, 128)
    f_out_pad = _round_up(f_out, 128)

    # Unnormalized int8 adjacency + exact f32 inverse in-degree.
    adj_f = adj.astype(jnp.float32)
    in_deg = adj_f.sum(axis=1)
    deg_inv = jnp.where(in_deg > 0, 1.0 / jnp.maximum(in_deg, 1.0), 0.0)

    a_p = jnp.pad(adj_f, ((0, n_pad - n), (0, n_pad - n))).astype(jnp.int8)
    dinv_p = jnp.pad(deg_inv, (0, n_pad - n)).reshape(n_pad, 1).astype(jnp.float32)
    x_p = jnp.pad(x, ((0, n_pad - n), (0, f_in_pad - f_in))).astype(jnp.bfloat16)
    w_p = jnp.pad(weight, ((0, f_in_pad - f_in), (0, f_out_pad - f_out))).astype(jnp.bfloat16)
    wr_p = jnp.pad(w_res, ((0, f_in_pad - f_in), (0, f_out_pad - f_out))).astype(jnp.bfloat16)
    b_p = jnp.pad(bias, (0, f_out_pad - f_out)).reshape(1, f_out_pad).astype(jnp.float32)
    br_p = jnp.pad(b_res, (0, f_out_pad - f_out)).reshape(1, f_out_pad).astype(jnp.float32)

    m_tiles = n_pad // tm
    k_tiles = n_pad // tk
    grid = (m_tiles, k_tiles)

    # Explicit scoped-VMEM budget: double-buffered streamed tiles + resident
    # weights + accumulator, with headroom; clamped for v7x (64 MiB physical).
    per_step = (
        tm * tk * 1                      # A tile (int8)
        + tm * 4                         # deg_inv tile
        + tk * f_in_pad * 2              # X k-chunk (bf16)
        + tm * f_in_pad * 2              # X row tile for residual (bf16)
        + 2 * f_in_pad * f_out_pad * 2   # W, W_res (bf16, resident)
        + 2 * f_out_pad * 4              # biases
        + tm * f_out_pad * 4             # output tile (f32)
    )
    vmem_limit = 2 * per_step + tm * f_in_pad * 4 + (4 << 20)
    vmem_limit = int(max(16 << 20, min(vmem_limit, 64 << 20)))

    flops = (2 * n_pad * n_pad * f_in_pad            # A @ X
             + 2 * n_pad * f_in_pad * f_out_pad      # (A X) @ W
             + 2 * n_pad * f_in_pad * f_out_pad)     # residual X @ W_res
    bytes_accessed = (
        n_pad * n_pad * 1                            # int8 adjacency stream
        + m_tiles * n_pad * f_in_pad * 2             # X re-streamed per row tile
        + n_pad * f_in_pad * 2                       # X row tiles (residual)
        + 2 * f_in_pad * f_out_pad * 2               # W, W_res
        + (2 * f_out_pad + n_pad) * 4                # biases + deg_inv
        + n_pad * f_out_pad * 4                      # output
    )

    out = pl.pallas_call(
        hetero_gc_kernel,
        out_shape=jax.ShapeDtypeStruct((n_pad, f_out_pad), jnp.float32),
        grid_spec=pltpu.PrefetchScalarGridSpec(
            num_scalar_prefetch=0,
            grid=grid,
            in_specs=[
                pl.BlockSpec((tm, tk), lambda i, k: (i, k)),             # A tile (int8)
                pl.BlockSpec((tm, 1), lambda i, k: (i, 0)),              # 1/in_deg rows
                pl.BlockSpec((tk, f_in_pad), lambda i, k: (k, 0)),       # X neighbor chunk
                pl.BlockSpec((tm, f_in_pad), lambda i, k: (i, 0)),       # X row tile (residual)
                pl.BlockSpec((f_in_pad, f_out_pad), lambda i, k: (0, 0)),  # W (resident)
                pl.BlockSpec((1, f_out_pad), lambda i, k: (0, 0)),       # bias
                pl.BlockSpec((f_in_pad, f_out_pad), lambda i, k: (0, 0)),  # W_res (resident)
                pl.BlockSpec((1, f_out_pad), lambda i, k: (0, 0)),       # b_res
            ],
            out_specs=pl.BlockSpec((tm, f_out_pad), lambda i, k: (i, 0)),
            scratch_shapes=[pltpu.VMEM((tm, f_in_pad), jnp.float32)],    # A@X accumulator
        ),
        compiler_params=pltpu.CompilerParams(
            dimension_semantics=("parallel", "arbitrary"),
            vmem_limit_bytes=vmem_limit),
        cost_estimate=pl.CostEstimate(
            flops=flops, transcendentals=0, bytes_accessed=bytes_accessed),
    )(a_p, dinv_p, x_p, x_p, w_p, b_p, wr_p, br_p)

    return out[:n, :f_out]


def reference_hetero_graph_conv(a_mean, x, weight, bias, w_res, b_res):
    """Pure-JAX reference matching the PyTorch module's forward."""
    feat = x @ weight                            # th.matmul(input_feat, weight)
    agg = a_mean @ feat                          # copy_src + mean reduce
    rst = jnp.maximum(agg + bias, 0.0)           # + bias, relu
    res = jnp.maximum(x @ w_res + b_res, 0.0)    # res_connection + relu
    return rst + res                             # dropout(p=0.0) == identity


if __name__ == "__main__":
    key = jax.random.PRNGKey(0)
    k_adj, k_x, k_w, k_b, k_wr, k_br = jax.random.split(key, 6)

    # Small graph: exercises padding (N not a tile multiple), the K-chunked
    # accumulator, and two parallel row tiles.
    N, IN_FEATS, OUT_FEATS = 200, 32, 32

    # Random directed graph: adj[dst, src] = 1 iff edge src -> dst.
    adj = (jax.random.uniform(k_adj, (N, N)) < 0.1).astype(jnp.float32)
    in_deg = adj.sum(axis=1)
    a_mean = jnp.where(in_deg[:, None] > 0,
                       adj / jnp.maximum(in_deg, 1.0)[:, None], 0.0)

    # Node features.
    x = jax.random.normal(k_x, (N, IN_FEATS), dtype=jnp.float32)

    # Parameters (xavier_uniform_ for self.weight, Linear-style init for the
    # residual branch; bias random here to exercise the add path).
    bound_w = float(jnp.sqrt(6.0 / (IN_FEATS + OUT_FEATS)))
    w = jax.random.uniform(k_w, (IN_FEATS, OUT_FEATS), jnp.float32, -bound_w, bound_w)
    b = 0.1 * jax.random.normal(k_b, (OUT_FEATS,), dtype=jnp.float32)
    bound_r = float(1.0 / jnp.sqrt(IN_FEATS))
    w_res = jax.random.uniform(k_wr, (IN_FEATS, OUT_FEATS), jnp.float32, -bound_r, bound_r)
    b_res = jax.random.uniform(k_br, (OUT_FEATS,), jnp.float32, -bound_r, bound_r)

    # Jit the wrapper so the adjacency pad/cast fuses with the call.
    fwd = jax.jit(lambda a, xx, ww, bb, wr, br:
                  hetero_graph_conv_pallas(a, xx, ww, bb, wr, br, tm=128, tk=128))
    out = jax.block_until_ready(fwd(adj, x, w, b, w_res, b_res))

    # Reference on the same bf16-rounded X/W operands the kernel feeds the
    # MXU; the adjacency/mean path is exact f32 in both.
    def _q(t):
        return t.astype(jnp.bfloat16).astype(jnp.float32)

    ref = reference_hetero_graph_conv(a_mean, _q(x), _q(w), b, _q(w_res), b_res)

    assert out.shape == (N, OUT_FEATS)
    max_err = float(jnp.max(jnp.abs(out - ref)))
    assert jnp.allclose(out, ref, atol=2e-2, rtol=2e-2), f"mismatch, max |err| = {max_err}"

    print("KERNEL_OK")
</pallas_src>

<mosaic_0001>
module attributes {stable_mosaic.version = 11 : i64} {
  func.func @hetero_gc_kernel(%arg0: i32, %arg1: i32, %arg2: memref<128x128xi8, #tpu.memory_space<vmem>>, %arg3: memref<128x1xf32, #tpu.memory_space<vmem>>, %arg4: memref<128x128xbf16, #tpu.memory_space<vmem>>, %arg5: memref<128x128xbf16, #tpu.memory_space<vmem>>, %arg6: memref<128x128xbf16, #tpu.memory_space<vmem>>, %arg7: memref<1x128xf32, #tpu.memory_space<vmem>>, %arg8: memref<128x128xbf16, #tpu.memory_space<vmem>>, %arg9: memref<1x128xf32, #tpu.memory_space<vmem>>, %arg10: memref<128x128xf32, #tpu.memory_space<vmem>>, %arg11: memref<128x128xf32, #tpu.memory_space<vmem>>) attributes {dimension_semantics = [#tpu.dimension_semantics<parallel>, #tpu.dimension_semantics<arbitrary>], iteration_bounds = array<i64: 2, 2>, scalar_prefetch = 0 : i64, scratch_operands = 1 : i64, tpu.core_type = #tpu.core_type<tc>, window_params = [{transform_indices = @transform_0, window_bounds = array<i64: 128, 128>}, {transform_indices = @transform_1, window_bounds = array<i64: 128, 1>}, {transform_indices = @transform_2, window_bounds = array<i64: 128, 128>}, {transform_indices = @transform_3, window_bounds = array<i64: 128, 128>}, {pipeline_mode = #tpu.pipeline_mode<synchronous>, transform_indices = @transform_4, window_bounds = array<i64: 128, 128>}, {pipeline_mode = #tpu.pipeline_mode<synchronous>, transform_indices = @transform_5, window_bounds = array<i64: 1, 128>}, {pipeline_mode = #tpu.pipeline_mode<synchronous>, transform_indices = @transform_6, window_bounds = array<i64: 128, 128>}, {pipeline_mode = #tpu.pipeline_mode<synchronous>, transform_indices = @transform_7, window_bounds = array<i64: 1, 128>}, {transform_indices = @transform_8, window_bounds = array<i64: 128, 128>}]} {
    %c0_i32 = arith.constant 0 : i32
    %0 = arith.cmpi eq, %arg1, %c0_i32 : i32
    %1 = arith.extui %0 : i1 to i32
    %c0_i32_0 = arith.constant 0 : i32
    %2 = arith.cmpi ne, %1, %c0_i32_0 : i32
    scf.if %2 {
      %cst_9 = arith.constant 0.000000e+00 : f32
      %13 = vector.broadcast %cst_9 : f32 to vector<128x128xf32>
      %c0_10 = arith.constant 0 : index
      %c0_11 = arith.constant 0 : index
      %14 = vector.load %arg11[%c0_10, %c0_11] : memref<128x128xf32, #tpu.memory_space<vmem>>, vector<128x128xf32>
      tpu.vector_store %arg11[%c0_10, %c0_11], %13 {strides = array<i32>} : memref<128x128xf32, #tpu.memory_space<vmem>>, vector<128x128xf32>,
    } else {
    }
    %c0 = arith.constant 0 : index
    %c0_1 = arith.constant 0 : index
    %3 = vector.load %arg2[%c0, %c0_1] : memref<128x128xi8, #tpu.memory_space<vmem>>, vector<128x128xi8>
    %4 = arith.sitofp %3 : vector<128x128xi8> to vector<128x128xbf16>
    %c0_2 = arith.constant 0 : index
    %c0_3 = arith.constant 0 : index
    %5 = vector.load %arg11[%c0_2, %c0_3] : memref<128x128xf32, #tpu.memory_space<vmem>>, vector<128x128xf32>
    %c0_4 = arith.constant 0 : index
    %c0_5 = arith.constant 0 : index
    %6 = vector.load %arg4[%c0_4, %c0_5] : memref<128x128xbf16, #tpu.memory_space<vmem>>, vector<128x128xbf16>
    %cst = arith.constant dense<0.000000e+00> : vector<128x128xf32>
    %7 = tpu.matmul %4, %6, %cst {dimension_numbers = #tpu.dot_dimension_numbers<[1], [0], [0], [1], [0, 0, 1, 1], [], []>} : vector<128x128xbf16>, vector<128x128xbf16>, vector<128x128xf32> -> vector<128x128xf32>
    %8 = arith.addf %5, %7 : vector<128x128xf32>
    %c0_6 = arith.constant 0 : index
    %c0_7 = arith.constant 0 : index
    %9 = vector.load %arg11[%c0_6, %c0_7] : memref<128x128xf32, #tpu.memory_space<vmem>>, vector<128x128xf32>
    tpu.vector_store %arg11[%c0_6, %c0_7], %8 {strides = array<i32>} : memref<128x128xf32, #tpu.memory_space<vmem>>, vector<128x128xf32>,
    %c1_i32 = arith.constant 1 : i32
    %10 = arith.cmpi eq, %arg1, %c1_i32 : i32
    %11 = arith.extui %10 : i1 to i32
    %c0_i32_8 = arith.constant 0 : i32
    %12 = arith.cmpi ne, %11, %c0_i32_8 : i32
    scf.if %12 {
      %c0_9 = arith.constant 0 : index
      %c0_10 = arith.constant 0 : index
      %13 = vector.load %arg11[%c0_9, %c0_10] : memref<128x128xf32, #tpu.memory_space<vmem>>, vector<128x128xf32>
      %c0_11 = arith.constant 0 : index
      %c0_12 = arith.constant 0 : index
      %14 = vector.load %arg3[%c0_11, %c0_12] : memref<128x1xf32, #tpu.memory_space<vmem>>, vector<128x1xf32>
      %15 = vector.broadcast %14 : vector<128x1xf32> to vector<128x128xf32>
      %16 = arith.mulf %13, %15 : vector<128x128xf32>
      %17 = arith.truncf %16 : vector<128x128xf32> to vector<128x128xbf16>
      %c0_13 = arith.constant 0 : index
      %c0_14 = arith.constant 0 : index
      %18 = vector.load %arg6[%c0_13, %c0_14] : memref<128x128xbf16, #tpu.memory_space<vmem>>, vector<128x128xbf16>
      %cst_15 = arith.constant dense<0.000000e+00> : vector<128x128xf32>
      %19 = tpu.matmul %17, %18, %cst_15 {dimension_numbers = #tpu.dot_dimension_numbers<[1], [0], [0], [1], [0, 0, 1, 1], [], []>} : vector<128x128xbf16>, vector<128x128xbf16>, vector<128x128xf32> -> vector<128x128xf32>
      %c0_16 = arith.constant 0 : index
      %c0_17 = arith.constant 0 : index
      %20 = vector.load %arg7[%c0_16, %c0_17] : memref<1x128xf32, #tpu.memory_space<vmem>>, vector<1x128xf32>
      %21 = vector.broadcast %20 : vector<1x128xf32> to vector<128x128xf32>
      %22 = arith.addf %19, %21 : vector<128x128xf32>
      %cst_18 = arith.constant 0.000000e+00 : f32
      %23 = vector.broadcast %cst_18 : f32 to vector<128x128xf32>
      %24 = arith.maximumf %22, %23 : vector<128x128xf32>
      %c0_19 = arith.constant 0 : index
      %c0_20 = arith.constant 0 : index
      %25 = vector.load %arg5[%c0_19, %c0_20] : memref<128x128xbf16, #tpu.memory_space<vmem>>, vector<128x128xbf16>
      %c0_21 = arith.constant 0 : index
      %c0_22 = arith.constant 0 : index
      %26 = vector.load %arg8[%c0_21, %c0_22] : memref<128x128xbf16, #tpu.memory_space<vmem>>, vector<128x128xbf16>
      %cst_23 = arith.constant dense<0.000000e+00> : vector<128x128xf32>
      %27 = tpu.matmul %25, %26, %cst_23 {dimension_numbers = #tpu.dot_dimension_numbers<[1], [0], [0], [1], [0, 0, 1, 1], [], []>} : vector<128x128xbf16>, vector<128x128xbf16>, vector<128x128xf32> -> vector<128x128xf32>
      %c0_24 = arith.constant 0 : index
      %c0_25 = arith.constant 0 : index
      %28 = vector.load %arg9[%c0_24, %c0_25] : memref<1x128xf32, #tpu.memory_space<vmem>>, vector<1x128xf32>
      %29 = vector.broadcast %28 : vector<1x128xf32> to vector<128x128xf32>
      %30 = arith.addf %27, %29 : vector<128x128xf32>
      %cst_26 = arith.constant 0.000000e+00 : f32
      %31 = vector.broadcast %cst_26 : f32 to vector<128x128xf32>
      %32 = arith.maximumf %30, %31 : vector<128x128xf32>
      %33 = arith.addf %24, %32 : vector<128x128xf32>
      %c0_27 = arith.constant 0 : index
      %c0_28 = arith.constant 0 : index
      %34 = vector.load %arg10[%c0_27, %c0_28] : memref<128x128xf32, #tpu.memory_space<vmem>>, vector<128x128xf32>
      tpu.vector_store %arg10[%c0_27, %c0_28], %33 {strides = array<i32>} : memref<128x128xf32, #tpu.memory_space<vmem>>, vector<128x128xf32>,
    } else {
    }
    return
  }
  func.func @transform_0(%arg0: i32, %arg1: i32) -> (i32, i32) {
    %c0_i32 = arith.constant 0 : i32
    return %arg0, %arg1 : i32, i32
  }
  func.func @transform_1(%arg0: i32, %arg1: i32) -> (i32, i32) {
    %c0_i32 = arith.constant 0 : i32
    %c0_i32_0 = arith.constant 0 : i32
    return %arg0, %c0_i32 : i32, i32
  }
  func.func @transform_2(%arg0: i32, %arg1: i32) -> (i32, i32) {
    %c0_i32 = arith.constant 0 : i32
    %c0_i32_0 = arith.constant 0 : i32
    return %arg1, %c0_i32 : i32, i32
  }
  func.func @transform_3(%arg0: i32, %arg1: i32) -> (i32, i32) {
    %c0_i32 = arith.constant 0 : i32
    %c0_i32_0 = arith.constant 0 : i32
    return %arg0, %c0_i32 : i32, i32
  }
  func.func @transform_4(%arg0: i32, %arg1: i32) -> (i32, i32) {
    %c0_i32 = arith.constant 0 : i32
    %c0_i32_0 = arith.constant 0 : i32
    %c0_i32_1 = arith.constant 0 : i32
    return %c0_i32, %c0_i32_0 : i32, i32
  }
  func.func @transform_5(%arg0: i32, %arg1: i32) -> (i32, i32) {
    %c0_i32 = arith.constant 0 : i32
    %c0_i32_0 = arith.constant 0 : i32
    %c0_i32_1 = arith.constant 0 : i32
    return %c0_i32, %c0_i32_0 : i32, i32
  }
  func.func @transform_6(%arg0: i32, %arg1: i32) -> (i32, i32) {
    %c0_i32 = arith.constant 0 : i32
    %c0_i32_0 = arith.constant 0 : i32
    %c0_i32_1 = arith.constant 0 : i32
    return %c0_i32, %c0_i32_0 : i32, i32
  }
  func.func @transform_7(%arg0: i32, %arg1: i32) -> (i32, i32) {
    %c0_i32 = arith.constant 0 : i32
    %c0_i32_0 = arith.constant 0 : i32
    %c0_i32_1 = arith.constant 0 : i32
    return %c0_i32, %c0_i32_0 : i32, i32
  }
  func.func @transform_8(%arg0: i32, %arg1: i32) -> (i32, i32) {
    %c0_i32 = arith.constant 0 : i32
    %c0_i32_0 = arith.constant 0 : i32
    return %arg0, %c0_i32 : i32, i32
  }
}

</mosaic_0001>

<llo_original>
// kernel: _lambda_.1
$region0: #{_lambda_.1}
  #allocation0 [shape = 'u32[]', space=smem, size = 0x4, offset = 0x4, fixed_abs, tag = 'smem constant byte address 0x4 - core index']
  #allocation1 [shape = 'u32[144,128]{1,0:T(1,128)}', space=vmem, size = 0x12000, scoped, tag = 'internal scratch']
  #allocation2 [shape = 'f32[128,128]{1,0:T(8,128)}', space=vmem, size = 0x10000, scoped, tag = 'scratch operand']
  %s0 = inlined_call_operand.vmem [shape: s8[256,256], index: 0, kind: input, shape index: {}]
  %s1 = inlined_call_operand.vmem [shape: f32[256,1], index: 1, kind: input, shape index: {}]
  %s2 = inlined_call_operand.vmem [shape: bf16[256,128], index: 2, kind: input, shape index: {}, may-alias: {2,3}]
  %s3 = inlined_call_operand.vmem [shape: bf16[256,128], index: 3, kind: input, shape index: {}, may-alias: {2,3}]
  %s4 = inlined_call_operand.vmem [shape: bf16[128,128], index: 4, kind: input, shape index: {}]
  %s5 = inlined_call_operand.vmem [shape: f32[1,128], index: 5, kind: input, shape index: {}]
  %s6 = inlined_call_operand.vmem [shape: bf16[128,128], index: 6, kind: input, shape index: {}]
  %s7 = inlined_call_operand.vmem [shape: f32[1,128], index: 7, kind: input, shape index: {}]
  %s8 = inlined_call_operand.vmem [shape: f32[256,128], index: 8, kind: output, shape index: {}]
  %s9 = sld [smem:[#allocation0]]
  $region111: #{_lambda_.1} parent=0
    _
  %s11 = ssub.s32 1, %s9
  %s12 = scalar_select 0, %s11, %s9
  $region1: #{_lambda_.1} parent=0
    #allocation3 [shape = 'u8[32768]{0}', space=vmem, size = 0x8000, scoped, tag = 'input window, operand 0']
    loop: start=0, step=1, limit=6
    $region2: #{_lambda_.1} parent=1 // loop_pre_header
      _
    $region3: #{_lambda_.1} parent=1 // loop_header
      %s14 = sphi 0, %s18
      %p15 = scmp.ge.s32.totalorder %s14, 6
      %s21 = sphi 0, %s33
      %s22 = sphi 0, %s29
      %s23 = sphi 0, %s21
      %s24 = sphi 0, %s22
      %s25 = sphi 0, %s23
      %s26 = sphi 0, %s24
      %s38 = sphi 0, %s40
      %s41 = sphi 0, %s38
      %s42 = sphi 0, %s41
      %s58 = sphi 0, %s42
      %s64 = sphi 0, %s66
      %s67 = sphi 0, %s64
      %s68 = sphi 0, %s67
      %s84 = sphi 0, %s68
      %s90 = sphi 0, %s92
      %s93 = sphi 0, %s90
      %s94 = sphi 0, %s93
      %s110 = sphi 0, %s94
      %s116 = sphi 0, %s118
      %s119 = sphi 0, %s116
      %s120 = sphi 0, %s119
      %s136 = sphi 0, %s120
      %s140 = sphi 0, %s140
      %s142 = sphi 0, %s140
      %s143 = sphi 0, %s142
      %s157 = sphi 0, %s143
      %s161 = sphi 0, %s161
      %s163 = sphi 0, %s161
      %s164 = sphi 0, %s163
      %s178 = sphi 0, %s164
      %s182 = sphi 0, %s182
      %s184 = sphi 0, %s182
      %s185 = sphi 0, %s184
      %s199 = sphi 0, %s185
      %s203 = sphi 0, %s203
      %s205 = sphi 0, %s203
      %s206 = sphi 0, %s205
      %s220 = sphi 0, %s206
      %s226 = sphi 0, %s228
      %s229 = sphi 0, %s226
      %s230 = sphi 0, %s229
      %s246 = sphi 0, %s230
    $region4: #{_lambda_.1} parent=1 // loop_header_branch
      %17 = sbr.rel (%p15) target = $region8
    $region5: #{_lambda_.1} parent=1 // loop_body
      %s19 = ssub.s32 %s14, 1
      %s20 = ssub.s32 %s14, 2
      %s27 = sadd.s32 1, %s22
      %p28 = scmp.ge.s32.totalorder %s27, 2
      %s29 = scalar_select %p28, 0, %s27
      %s30 = sadd.s32 1, %s21
      %s31 = scalar_select %p28, %s30, %s21
      %p32 = scmp.ge.s32.totalorder %s31, 2
      %s33 = scalar_select %p32, 0, %s31
      %s34 = ssub.s32 %s21, %s33
      %s35 = ssub.s32 %s22, %s29
      %s36 = sor.u32 %s34, %s35
      %p37 = scmp.eq.s32.totalorder %s36, 0
      %s39 = sadd.s32 %s38, 1
      %s40 = scalar_select %p37, %s38, %s39
      %p43 = pneg %p37
      %p44 = scmp.eq.s32.totalorder %s14, 3
      %p45 = por %p43, %p44
      %p46 = scmp.ne.s32.totalorder %s38, %s41
      %p47 = scmp.eq.s32.totalorder %s14, 0
      %p48 = por %p46, %p47
      %p49 = scmp.ne.s32.totalorder %s38, %s41
      %p50 = scmp.eq.s32.totalorder %s19, 3
      %p51 = por %p49, %p50
      %p52 = scmp.ne.s32.totalorder %s41, %s42
      %p53 = scmp.eq.s32.totalorder %s19, 0
      %p54 = por %p52, %p53
      %p55 = scmp.ne.s32.totalorder %s41, %s42
      %p56 = scmp.eq.s32.totalorder %s20, 3
      %p57 = por %p55, %p56
      %p59 = scmp.ne.s32.totalorder %s42, %s58
      %p60 = scmp.eq.s32.totalorder %s20, 0
      %p61 = por %p59, %p60
      %s62 = ssub.s32 %s21, %s33
      %p63 = scmp.eq.s32.totalorder %s62, 0
      %s65 = sadd.s32 %s64, 1
      %s66 = scalar_select %p63, %s64, %s65
      %p69 = pneg %p63
      %p70 = scmp.eq.s32.totalorder %s14, 3
      %p71 = por %p69, %p70
      %p72 = scmp.ne.s32.totalorder %s64, %s67
      %p73 = scmp.eq.s32.totalorder %s14, 0
      %p74 = por %p72, %p73
      %p75 = scmp.ne.s32.totalorder %s64, %s67
      %p76 = scmp.eq.s32.totalorder %s19, 3
      %p77 = por %p75, %p76
      %p78 = scmp.ne.s32.totalorder %s67, %s68
      %p79 = scmp.eq.s32.totalorder %s19, 0
      %p80 = por %p78, %p79
      %p81 = scmp.ne.s32.totalorder %s67, %s68
      %p82 = scmp.eq.s32.totalorder %s20, 3
      %p83 = por %p81, %p82
      %p85 = scmp.ne.s32.totalorder %s68, %s84
      %p86 = scmp.eq.s32.totalorder %s20, 0
      %p87 = por %p85, %p86
      %s88 = ssub.s32 %s22, %s29
      %p89 = scmp.eq.s32.totalorder %s88, 0
      %s91 = sadd.s32 %s90, 1
      %s92 = scalar_select %p89, %s90, %s91
      %p95 = pneg %p89
      %p96 = scmp.eq.s32.totalorder %s14, 3
      %p97 = por %p95, %p96
      %p98 = scmp.ne.s32.totalorder %s90, %s93
      %p99 = scmp.eq.s32.totalorder %s14, 0
      %p100 = por %p98, %p99
      %p101 = scmp.ne.s32.totalorder %s90, %s93
      %p102 = scmp.eq.s32.totalorder %s19, 3
      %p103 = por %p101, %p102
      %p104 = scmp.ne.s32.totalorder %s93, %s94
      %p105 = scmp.eq.s32.totalorder %s19, 0
      %p106 = por %p104, %p105
      %p107 = scmp.ne.s32.totalorder %s93, %s94
      %p108 = scmp.eq.s32.totalorder %s20, 3
      %p109 = por %p107, %p108
      %p111 = scmp.ne.s32.totalorder %s94, %s110
      %p112 = scmp.eq.s32.totalorder %s20, 0
      %p113 = por %p111, %p112
      %s114 = ssub.s32 %s21, %s33
      %p115 = scmp.eq.s32.totalorder %s114, 0
      %s117 = sadd.s32 %s116, 1
      %s118 = scalar_select %p115, %s116, %s117
      %p121 = pneg %p115
      %p122 = scmp.eq.s32.totalorder %s14, 3
      %p123 = por %p121, %p122
      %p124 = scmp.ne.s32.totalorder %s116, %s119
      %p125 = scmp.eq.s32.totalorder %s14, 0
      %p126 = por %p124, %p125
      %p127 = scmp.ne.s32.totalorder %s116, %s119
      %p128 = scmp.eq.s32.totalorder %s19, 3
      %p129 = por %p127, %p128
      %p130 = scmp.ne.s32.totalorder %s119, %s120
      %p131 = scmp.eq.s32.totalorder %s19, 0
      %p132 = por %p130, %p131
      %p133 = scmp.ne.s32.totalorder %s119, %s120
      %p134 = scmp.eq.s32.totalorder %s20, 3
      %p135 = por %p133, %p134
      %p137 = scmp.ne.s32.totalorder %s120, %s136
      %p138 = scmp.eq.s32.totalorder %s20, 0
      %p139 = por %p137, %p138
      %s141 = sadd.s32 %s140, 1
      %p144 = scmp.eq.s32.totalorder %s14, 3
      %p145 = scmp.ne.s32.totalorder %s140, %s142
      %p146 = scmp.eq.s32.totalorder %s14, 0
      %p147 = por %p145, %p146
      %p148 = scmp.ne.s32.totalorder %s140, %s142
      %p149 = scmp.eq.s32.totalorder %s19, 3
      %p150 = por %p148, %p149
      %p151 = scmp.ne.s32.totalorder %s142, %s143
      %p152 = scmp.eq.s32.totalorder %s19, 0
      %p153 = por %p151, %p152
      %p154 = scmp.ne.s32.totalorder %s142, %s143
      %p155 = scmp.eq.s32.totalorder %s20, 3
      %p156 = por %p154, %p155
      %p158 = scmp.ne.s32.totalorder %s143, %s157
      %p159 = scmp.eq.s32.totalorder %s20, 0
      %p160 = por %p158, %p159
      %s162 = sadd.s32 %s161, 1
      %p165 = scmp.eq.s32.totalorder %s14, 3
      %p166 = scmp.ne.s32.totalorder %s161, %s163
      %p167 = scmp.eq.s32.totalorder %s14, 0
      %p168 = por %p166, %p167
      %p169 = scmp.ne.s32.totalorder %s161, %s163
      %p170 = scmp.eq.s32.totalorder %s19, 3
      %p171 = por %p169, %p170
      %p172 = scmp.ne.s32.totalorder %s163, %s164
      %p173 = scmp.eq.s32.totalorder %s19, 0
      %p174 = por %p172, %p173
      %p175 = scmp.ne.s32.totalorder %s163, %s164
      %p176 = scmp.eq.s32.totalorder %s20, 3
      %p177 = por %p175, %p176
      %p179 = scmp.ne.s32.totalorder %s164, %s178
      %p180 = scmp.eq.s32.totalorder %s20, 0
      %p181 = por %p179, %p180
      %s183 = sadd.s32 %s182, 1
      %p186 = scmp.eq.s32.totalorder %s14, 3
      %p187 = scmp.ne.s32.totalorder %s182, %s184
      %p188 = scmp.eq.s32.totalorder %s14, 0
      %p189 = por %p187, %p188
      %p190 = scmp.ne.s32.totalorder %s182, %s184
      %p191 = scmp.eq.s32.totalorder %s19, 3
      %p192 = por %p190, %p191
      %p193 = scmp.ne.s32.totalorder %s184, %s185
      %p194 = scmp.eq.s32.totalorder %s19, 0
      %p195 = por %p193, %p194
      %p196 = scmp.ne.s32.totalorder %s184, %s185
      %p197 = scmp.eq.s32.totalorder %s20, 3
      %p198 = por %p196, %p197
      %p200 = scmp.ne.s32.totalorder %s185, %s199
      %p201 = scmp.eq.s32.totalorder %s20, 0
      %p202 = por %p200, %p201
      %s204 = sadd.s32 %s203, 1
      %p207 = scmp.eq.s32.totalorder %s14, 3
      %p208 = scmp.ne.s32.totalorder %s203, %s205
      %p209 = scmp.eq.s32.totalorder %s14, 0
      %p210 = por %p208, %p209
      %p211 = scmp.ne.s32.totalorder %s203, %s205
      %p212 = scmp.eq.s32.totalorder %s19, 3
      %p213 = por %p211, %p212
      %p214 = scmp.ne.s32.totalorder %s205, %s206
      %p215 = scmp.eq.s32.totalorder %s19, 0
      %p216 = por %p214, %p215
      %p217 = scmp.ne.s32.totalorder %s205, %s206
      %p218 = scmp.eq.s32.totalorder %s20, 3
      %p219 = por %p217, %p218
      %p221 = scmp.ne.s32.totalorder %s206, %s220
      %p222 = scmp.eq.s32.totalorder %s20, 0
      %p223 = por %p221, %p222
      %s224 = ssub.s32 %s21, %s33
      %p225 = scmp.eq.s32.totalorder %s224, 0
      %s227 = sadd.s32 %s226, 1
      %s228 = scalar_select %p225, %s226, %s227
      %p231 = pneg %p225
      %p232 = scmp.eq.s32.totalorder %s14, 3
      %p233 = por %p231, %p232
      %p234 = scmp.ne.s32.totalorder %s226, %s229
      %p235 = scmp.eq.s32.totalorder %s14, 0
      %p236 = por %p234, %p235
      %p237 = scmp.ne.s32.totalorder %s226, %s229
      %p238 = scmp.eq.s32.totalorder %s19, 3
      %p239 = por %p237, %p238
      %p240 = scmp.ne.s32.totalorder %s229, %s230
      %p241 = scmp.eq.s32.totalorder %s19, 0
      %p242 = por %p240, %p241
      %p243 = scmp.ne.s32.totalorder %s229, %s230
      %p244 = scmp.eq.s32.totalorder %s20, 3
      %p245 = por %p243, %p244
      %p247 = scmp.ne.s32.totalorder %s230, %s246
      %p248 = scmp.eq.s32.totalorder %s20, 0
      %p249 = por %p247, %p248
      %p250 = scmp.le.s32.totalorder 1, %s14
      %p251 = scmp.lt.s32.totalorder %s14, 5
      %p252 = pnand %p250, %p251
      %p253 = pneg %p252
      // Predicated region
      $region9: #{_lambda_.1} parent=5 // pred_check
        _
      $region10: #{_lambda_.1} parent=5 // pred_check_branch
        %255 = sbr.rel (%p252) target = $region12
      $region11: #{_lambda_.1} parent=5 // pred_region
        %s256 = ssub.s32 %s14, 1
        // Predicated region
        $region13: #{_lambda_.1} parent=11 // pred_check
          %p257 = pneg %p153
        $region14: #{_lambda_.1} parent=11 // pred_check_branch
          %259 = sbr.rel (%p257) target = $region16
        $region15: #{_lambda_.1} parent=11 // pred_region
          _
        $region16: #{_lambda_.1} parent=11 // pred_fallthru
          _
        // Predicated region
        $region17: #{_lambda_.1} parent=11 // pred_check
          %p260 = pneg %p174
        $region18: #{_lambda_.1} parent=11 // pred_check_branch
          %262 = sbr.rel (%p260) target = $region20
        $region19: #{_lambda_.1} parent=11 // pred_region
          _
        $region20: #{_lambda_.1} parent=11 // pred_fallthru
          _
        // Predicated region
        $region21: #{_lambda_.1} parent=11 // pred_check
          %p263 = pneg %p195
        $region22: #{_lambda_.1} parent=11 // pred_check_branch
          %265 = sbr.rel (%p263) target = $region24
        $region23: #{_lambda_.1} parent=11 // pred_region
          _
        $region24: #{_lambda_.1} parent=11 // pred_fallthru
          _
        // Predicated region
        $region25: #{_lambda_.1} parent=11 // pred_check
          %p266 = pneg %p216
        $region26: #{_lambda_.1} parent=11 // pred_check_branch
          %268 = sbr.rel (%p266) target = $region28
        $region27: #{_lambda_.1} parent=11 // pred_region
          _
        $region28: #{_lambda_.1} parent=11 // pred_fallthru
          _
      $region12: #{_lambda_.1} parent=5 // pred_fallthru
        _
      %p269 = scmp.lt.s32.totalorder %s14, 4
      // Predicated region
      $region29: #{_lambda_.1} parent=5 // pred_check
        %p270 = pneg %p269
      $region30: #{_lambda_.1} parent=5 // pred_check_branch
        %272 = sbr.rel (%p270) target = $region32
      $region31: #{_lambda_.1} parent=5 // pred_region
        // Predicated region
        $region33: #{_lambda_.1} parent=31 // pred_check
          %p273 = pneg %p48
        $region34: #{_lambda_.1} parent=31 // pred_check_branch
          %275 = sbr.rel (%p273) target = $region36
        $region35: #{_lambda_.1} parent=31 // pred_region
          %s276 = sand.u32 %s38, 1
          %s277 = sand.u32 %s38, 1
          %s278 = smul.addr %s277, 32
          %s279 = scalar_lea.vmem [#allocation3], %s278
          %s280 = smul.u32 4, %s21
          %s281 = smul.addr %s280, 2
          %s282 = sadd.s32 %s22, %s281
          %s283 = smul.addr %s282, 8
          %s284 = scalar_lea.vmem %s0, %s283
          // Predicated region
          $region37: #{_lambda_.1} parent=35 // pred_check
            _
          $region38: #{_lambda_.1} parent=35 // pred_check_branch
            %286 = sbr.rel (0) target = $region40
          $region39: #{_lambda_.1} parent=35 // pred_region
            // Predicated region
            $region41: #{_lambda_.1} parent=39 // pred_check
              _
            $region42: #{_lambda_.1} parent=39 // pred_check_branch
              %288 = sbr.rel (0) target = $region44
            $region43: #{_lambda_.1} parent=39 // pred_region
              // Predicated region
              $region56: #{_lambda_.1} parent=43 // pred_check
                _
              $region57: #{_lambda_.1} parent=43 // pred_check_branch
                %309 = sbr.rel (0) target = $region59
              $region58: #{_lambda_.1} parent=43 // pred_region
                loop: start=0, step=1, limit=1
                $region60: #{_lambda_.1} parent=58 // loop_pre_header
                  _
                $region61: #{_lambda_.1} parent=58 // loop_header
                  %s311 = sphi 0, %s315
                  %p312 = scmp.ge.s32.totalorder %s311, 1
                  %s316 = sphi %s284, %s284
                  %s317 = sphi %s279, %s279
                $region62: #{_lambda_.1} parent=58 // loop_header_branch
                  %314 = sbr.rel (%p312) target = $region66
                $region63: #{_lambda_.1} parent=58 // loop_body
                  %v318 = vld [vmem:[%s316] sm:$0xff]
                  %319 = vst [vmem:[%s317] sm:$0xff] %v318
                  %v320 = vld [vmem:[%s316 + $0x10] sm:$0xff]
                  %321 = vst [vmem:[%s317 + $0x8] sm:$0xff] %v320
                  %v322 = vld [vmem:[%s316 + $0x20] sm:$0xff]
                  %323 = vst [vmem:[%s317 + $0x10] sm:$0xff] %v322
                  %v324 = vld [vmem:[%s316 + $0x30] sm:$0xff]
                  %325 = vst [vmem:[%s317 + $0x18] sm:$0xff] %v324
                $region64: #{_lambda_.1} parent=58 // loop_footer
                  %s315 = sadd.s32 1, %s311
                $region65: #{_lambda_.1} parent=58 // loop_footer_branch
                  %310 = sbr.rel target = $region61
                $region66: #{_lambda_.1} parent=58 // loop_exit
                  _
              $region59: #{_lambda_.1} parent=43 // pred_fallthru
                _
              // Predicated region
              $region67: #{_lambda_.1} parent=43 // pred_check
                _
              $region68: #{_lambda_.1} parent=43 // pred_check_branch
                %327 = sbr.rel target = $region70
              $region69: #{_lambda_.1} parent=43 // pred_region
                _
              $region70: #{_lambda_.1} parent=43 // pred_fallthru
                _
            $region44: #{_lambda_.1} parent=39 // pred_fallthru
              _
            // Predicated region
            $region45: #{_lambda_.1} parent=39 // pred_check
              _
            $region46: #{_lambda_.1} parent=39 // pred_check_branch
              %290 = sbr.rel target = $region48
            $region47: #{_lambda_.1} parent=39 // pred_region
              loop: start=0, step=1, limit=1
              $region49: #{_lambda_.1} parent=47 // loop_pre_header
                _
              $region50: #{_lambda_.1} parent=47 // loop_header
                %s293 = sphi 0, %s297
                %p294 = scmp.ge.s32.totalorder %s293, 1
                %s298 = sphi %s284, %s284
                %s299 = sphi %s279, %s279
              $region51: #{_lambda_.1} parent=47 // loop_header_branch
                %296 = sbr.rel (%p294) target = $region55
              $region52: #{_lambda_.1} parent=47 // loop_body
                %v300 = vld [vmem:[%s298] sm:$0xff]
                %301 = vst [vmem:[%s299] sm:$0xff] %v300
                %v302 = vld [vmem:[%s298 + $0x10] sm:$0xff]
                %303 = vst [vmem:[%s299 + $0x8] sm:$0xff] %v302
                %v304 = vld [vmem:[%s298 + $0x20] sm:$0xff]
                %305 = vst [vmem:[%s299 + $0x10] sm:$0xff] %v304
                %v306 = vld [vmem:[%s298 + $0x30] sm:$0xff]
                %307 = vst [vmem:[%s299 + $0x18] sm:$0xff] %v306
              $region53: #{_lambda_.1} parent=47 // loop_footer
                %s297 = sadd.s32 1, %s293
              $region54: #{_lambda_.1} parent=47 // loop_footer_branch
                %292 = sbr.rel target = $region50
              $region55: #{_lambda_.1} parent=47 // loop_exit
                _
            $region48: #{_lambda_.1} parent=39 // pred_fallthru
              _
          $region40: #{_lambda_.1} parent=35 // pred_fallthru
            _
          %328 = vnop
        $region36: #{_lambda_.1} parent=31 // pred_fallthru
          _
        // Predicated region
        $region71: #{_lambda_.1} parent=31 // pred_check
          %p329 = pneg %p74
        $region72: #{_lambda_.1} parent=31 // pred_check_branch
          %331 = sbr.rel (%p329) target = $region74
        $region73: #{_lambda_.1} parent=31 // pred_region
          %s332 = smul.u32 16, %s21
          %p333 = scmp.lt.s32.totalorder %s332, 31
          %s334 = scalar_select %p333, %s332, 31
          %s335 = smul.addr %s334, 8
          %s336 = scalar_lea.vmem %s1, %s335
          %s337 = smul.u32 16, %s21
        $region74: #{_lambda_.1} parent=31 // pred_fallthru
          _
        // Predicated region
        $region75: #{_lambda_.1} parent=31 // pred_check
          %p338 = pneg %p100
        $region76: #{_lambda_.1} parent=31 // pred_check_branch
          %340 = sbr.rel (%p338) target = $region78
        $region77: #{_lambda_.1} parent=31 // pred_region
          %s341 = smul.u32 16, %s22
          %p342 = scmp.lt.s32.totalorder %s341, 31
          %s343 = scalar_select %p342, %s341, 31
          %s344 = smul.addr %s343, 4
          %s345 = scalar_lea.vmem %s2, %s344
          %s346 = smul.u32 16, %s22
        $region78: #{_lambda_.1} parent=31 // pred_fallthru
          _
        // Predicated region
        $region79: #{_lambda_.1} parent=31 // pred_check
          %p347 = pneg %p126
        $region80: #{_lambda_.1} parent=31 // pred_check_branch
          %349 = sbr.rel (%p347) target = $region82
        $region81: #{_lambda_.1} parent=31 // pred_region
          %s350 = smul.u32 16, %s21
          %p351 = scmp.lt.s32.totalorder %s350, 31
          %s352 = scalar_select %p351, %s350, 31
          %s353 = smul.addr %s352, 4
          %s354 = scalar_lea.vmem %s3, %s353
          %s355 = smul.u32 16, %s21
        $region82: #{_lambda_.1} parent=31 // pred_fallthru
          _
      $region32: #{_lambda_.1} parent=5 // pred_fallthru
        _
      %p356 = scmp.le.s32.totalorder 1, %s14
      %p357 = scmp.lt.s32.totalorder %s14, 5
      %p358 = pnand %p356, %p357
      %p359 = pneg %p358
      // Predicated region
      $region83: #{_lambda_.1} parent=5 // pred_check
        _
      $region84: #{_lambda_.1} parent=5 // pred_check_branch
        %361 = sbr.rel (%p358) target = $region86
      $region85: #{_lambda_.1} parent=5 // pred_region
        %s362 = ssub.s32 %s14, 1
        %s363 = sand.u32 %s41, 1
        %s364 = sand.u32 %s41, 1
        %s365 = smul.addr %s364, 32
        %s366 = scalar_lea.vmem [#allocation3], %s365
        // Predicated region
        $region87: #{_lambda_.1} parent=85 // pred_check
          %p367 = pneg %p54
        $region88: #{_lambda_.1} parent=85 // pred_check_branch
          %369 = sbr.rel (%p367) target = $region90
        $region89: #{_lambda_.1} parent=85 // pred_region
          _
        $region90: #{_lambda_.1} parent=85 // pred_fallthru
          _
        %s370 = sand.u32 %s41, 1
        %s371 = sand.u32 %s41, 1
        %s372 = smul.addr %s371, 32
        %s373 = scalar_lea.vmem [#allocation3], %s372
        %p374 = pneg %p54
        %p375 = pneg %p51
        %s376 = smul.u32 16, %s23
        %p377 = scmp.lt.s32.totalorder %s376, 31
        %s378 = scalar_select %p377, %s376, 31
        %s379 = smul.addr %s378, 8
        %s380 = scalar_lea.vmem %s1, %s379
        %p381 = pneg %p80
        %p382 = pneg %p77
        %s383 = smul.u32 16, %s24
        %p384 = scmp.lt.s32.totalorder %s383, 31
        %s385 = scalar_select %p384, %s383, 31
        %s386 = smul.addr %s385, 4
        %s387 = scalar_lea.vmem %s2, %s386
        %p388 = pneg %p106
        %p389 = pneg %p103
        %s390 = smul.u32 16, %s23
        %p391 = scmp.lt.s32.totalorder %s390, 31
        %s392 = scalar_select %p391, %s390, 31
        %s393 = smul.addr %s392, 4
        %s394 = scalar_lea.vmem %s3, %s393
        %p395 = pneg %p132
        %p396 = pneg %p129
        %p397 = pneg %p153
        %p398 = pneg %p150
        %p399 = pneg %p174
        %p400 = pneg %p171
        %p401 = pneg %p195
        %p402 = pneg %p192
        %p403 = pneg %p216
        %p404 = pneg %p213
        %p405 = pneg %p242
        %p406 = pneg %p239
        %s407 = smul.u32 16, %s23
        %p408 = scmp.lt.s32.totalorder %s407, 31
        %s409 = scalar_select %p408, %s407, 31
        %s410 = smul.addr %s409, 8
        %s411 = scalar_lea.vmem %s8, %s410
        %s412 = smul.u32 4, %s23
        %s413 = smul.u32 16, %s23
        %p414 = scmp.lt.s32.totalorder %s413, 31
        %s415 = scalar_select %p414, %s413, 31
        %s416 = smul.addr %s415, 8
        %s417 = scalar_lea.vmem %s1, %s416
        %s418 = smul.u32 16, %s23
        %s419 = smul.u32 16, %s24
        %p420 = scmp.lt.s32.totalorder %s419, 31
        %s421 = scalar_select %p420, %s419, 31
        %s422 = smul.addr %s421, 4
        %s423 = scalar_lea.vmem %s2, %s422
        %s424 = smul.u32 16, %s24
        %s425 = smul.u32 16, %s23
        %p426 = scmp.lt.s32.totalorder %s425, 31
        %s427 = scalar_select %p426, %s425, 31
        %s428 = smul.addr %s427, 4
        %s429 = scalar_lea.vmem %s3, %s428
        %s430 = smul.u32 16, %s23
        %s431 = smul.u32 16, %s23
        %p432 = scmp.lt.s32.totalorder %s431, 31
        %s433 = scalar_select %p432, %s431, 31
        %s434 = smul.addr %s433, 8
        %s435 = scalar_lea.vmem %s8, %s434
        %s436 = smul.u32 16, %s23
        %p438 = scmp.eq.s32.totalorder %s24, 0
        // Predicated region
        $region91: #{_lambda_.1} parent=85 // pred_check
          %p439 = pneg %p438
        $region92: #{_lambda_.1} parent=85 // pred_check_branch
          %441 = sbr.rel (%p439) target = $region94
        $region93: #{_lambda_.1} parent=85 // pred_region
          %442 = vst [vmem:[#allocation2] sm:$0xff] 0.0
          %443 = vst [vmem:[#allocation2 + $0x8] sm:$0xff] 0.0
          %444 = vst [vmem:[#allocation2 + $0x10] sm:$0xff] 0.0
          %445 = vst [vmem:[#allocation2 + $0x18] sm:$0xff] 0.0
          %446 = vst [vmem:[#allocation2 + $0x20] sm:$0xff] 0.0
          %447 = vst [vmem:[#allocation2 + $0x28] sm:$0xff] 0.0
          %448 = vst [vmem:[#allocation2 + $0x30] sm:$0xff] 0.0
          %449 = vst [vmem:[#allocation2 + $0x38] sm:$0xff] 0.0
          %450 = vst [vmem:[#allocation2 + $0x40] sm:$0xff] 0.0
          %451 = vst [vmem:[#allocation2 + $0x48] sm:$0xff] 0.0
          %452 = vst [vmem:[#allocation2 + $0x50] sm:$0xff] 0.0
          %453 = vst [vmem:[#allocation2 + $0x58] sm:$0xff] 0.0
          %454 = vst [vmem:[#allocation2 + $0x60] sm:$0xff] 0.0
          %455 = vst [vmem:[#allocation2 + $0x68] sm:$0xff] 0.0
          %456 = vst [vmem:[#allocation2 + $0x70] sm:$0xff] 0.0
          %457 = vst [vmem:[#allocation2 + $0x78] sm:$0xff] 0.0
        $region94: #{_lambda_.1} parent=85 // pred_fallthru
          _
        %v458 = vld [vmem:[%s366] sm:$0xff]
        %v459 = vld [vmem:[%s366 + $0x8] sm:$0xff]
        %v460 = vld [vmem:[%s366 + $0x10] sm:$0xff]
        %v461 = vld [vmem:[%s366 + $0x18] sm:$0xff]
        %v462 = vunpack.c.l.s8.bf16 %v458
        %v463 = vunpack.c.h.s8.bf16 %v458
        %v464 = vunpack.c.l.s8.bf16 %v459
        %v465 = vunpack.c.h.s8.bf16 %v459
        %v466 = vunpack.c.l.s8.bf16 %v460
        %v467 = vunpack.c.h.s8.bf16 %v460
        %v468 = vunpack.c.l.s8.bf16 %v461
        %v469 = vunpack.c.h.s8.bf16 %v461
        %v470 = vld [vmem:[#allocation2] sm:$0xff]
        %v471 = vld [vmem:[#allocation2 + $0x8] sm:$0xff]
        %v472 = vld [vmem:[#allocation2 + $0x10] sm:$0xff]
        %v473 = vld [vmem:[#allocation2 + $0x18] sm:$0xff]
        %v474 = vld [vmem:[#allocation2 + $0x20] sm:$0xff]
        %v475 = vld [vmem:[#allocation2 + $0x28] sm:$0xff]
        %v476 = vld [vmem:[#allocation2 + $0x30] sm:$0xff]
        %v477 = vld [vmem:[#allocation2 + $0x38] sm:$0xff]
        %v478 = vld [vmem:[#allocation2 + $0x40] sm:$0xff]
        %v479 = vld [vmem:[#allocation2 + $0x48] sm:$0xff]
        %v480 = vld [vmem:[#allocation2 + $0x50] sm:$0xff]
        %v481 = vld [vmem:[#allocation2 + $0x58] sm:$0xff]
        %v482 = vld [vmem:[#allocation2 + $0x60] sm:$0xff]
        %v483 = vld [vmem:[#allocation2 + $0x68] sm:$0xff]
        %v484 = vld [vmem:[#allocation2 + $0x70] sm:$0xff]
        %v485 = vld [vmem:[#allocation2 + $0x78] sm:$0xff]
        %v486 = vld [vmem:[%s423] sm:$0xf]
        %v487 = vld [vmem:[%s423 + $0x4] sm:$0xf]
        %v488 = vld [vmem:[%s423 + $0x8] sm:$0xf]
        %v489 = vld [vmem:[%s423 + $0xc] sm:$0xf]
        %v490 = vld [vmem:[%s423 + $0x10] sm:$0xf]
        %v491 = vld [vmem:[%s423 + $0x14] sm:$0xf]
        %v492 = vld [vmem:[%s423 + $0x18] sm:$0xf]
        %v493 = vld [vmem:[%s423 + $0x1c] sm:$0xf]
        %v494 = vld [vmem:[%s423 + $0x20] sm:$0xf]
        %v495 = vld [vmem:[%s423 + $0x24] sm:$0xf]
        %v496 = vld [vmem:[%s423 + $0x28] sm:$0xf]
        %v497 = vld [vmem:[%s423 + $0x2c] sm:$0xf]
        %v498 = vld [vmem:[%s423 + $0x30] sm:$0xf]
        %v499 = vld [vmem:[%s423 + $0x34] sm:$0xf]
        %v500 = vld [vmem:[%s423 + $0x38] sm:$0xf]
        %v501 = vld [vmem:[%s423 + $0x3c] sm:$0xf]
        %v518 = vunpack.c.l.b16 %v486
        %v519 = vunpack.c.l.b16 %v487
        %v520 = vunpack.c.l.b16 %v488
        %v521 = vunpack.c.l.b16 %v489
        %v522 = vunpack.c.l.b16 %v490
        %v523 = vunpack.c.l.b16 %v491
        %v524 = vunpack.c.l.b16 %v492
        %v525 = vunpack.c.l.b16 %v493
        %v526 = vunpack.c.l.b16 %v494
        %v527 = vunpack.c.l.b16 %v495
        %v528 = vunpack.c.l.b16 %v496
        %v529 = vunpack.c.l.b16 %v497
        %v530 = vunpack.c.l.b16 %v498
        %v531 = vunpack.c.l.b16 %v499
        %v532 = vunpack.c.l.b16 %v500
        %v533 = vunpack.c.l.b16 %v501
        %v534 = vpack.c.b16 %v519, %v518
        %v535 = vpack.c.b16 %v521, %v520
        %v536 = vpack.c.b16 %v523, %v522
        %v537 = vpack.c.b16 %v525, %v524
        %v538 = vpack.c.b16 %v527, %v526
        %v539 = vpack.c.b16 %v529, %v528
        %v540 = vpack.c.b16 %v531, %v530
        %v541 = vpack.c.b16 %v533, %v532
        %550 = vmatprep.subr.bf16.mxu0 0
        %551 = vmatpush1.bf16.msra.mxu0 %v534
        %552 = vmatprep.subr.bf16.mxu0 0
        %553 = vmatpush1.bf16.msra.mxu0 %v535
        %554 = vmatprep.subr.bf16.mxu0 0
        %555 = vmatpush1.bf16.msra.mxu0 %v536
        %556 = vmatprep.subr.bf16.mxu0 0
        %557 = vmatpush1.bf16.msra.mxu0 %v537
        %558 = vmatprep.subr.bf16.mxu0 0
        %559 = vmatpush1.bf16.msra.mxu0 %v538
        %560 = vmatprep.subr.bf16.mxu0 0
        %561 = vmatpush1.bf16.msra.mxu0 %v539
        %562 = vmatprep.subr.bf16.mxu0 0
        %563 = vmatpush1.bf16.msra.mxu0 %v540
        %564 = vmatprep.subr.bf16.mxu0 0
        %565 = vmatpush1.bf16.msra.mxu0 %v541
        %566 = vmatprep.subr.bf16.mxu0 0
        %567 = vmatpush1.bf16.msra.mxu0 0
        %568 = vmatprep.subr.bf16.mxu0 0
        %569 = vmatpush1.bf16.msra.mxu0 0
        %570 = vmatprep.subr.bf16.mxu0 0
        %571 = vmatpush1.bf16.msra.mxu0 0
        %572 = vmatprep.subr.bf16.mxu0 0
        %573 = vmatpush1.bf16.msra.mxu0 0
        %574 = vmatprep.subr.bf16.mxu0 0
        %575 = vmatpush1.bf16.msra.mxu0 0
        %576 = vmatprep.subr.bf16.mxu0 0
        %577 = vmatpush1.bf16.msra.mxu0 0
        %578 = vmatprep.subr.bf16.mxu0 0
        %579 = vmatpush1.bf16.msra.mxu0 0
        %580 = vmatprep.subr.bf16.mxu0 0
        %581 = vmatpush1.bf16.msra.mxu0 0
        %582 = vmatprep.mubr.bf16.mxu0 0
        %583 = vmatmul.mubr.bf16.gmra.mrb[0].mxu0 %v462
        %v584 = vpop.f32.mrb[0].mxu0
        %v585 = vadd.f32 0.0, %v584
        %v586 = vpop.f32.mrb[0].mxu0
        %v587 = vpop.f32.mrb[0].mxu0
        %v588 = vadd.f32 0.0, %v587
        %v589 = vpop.f32.mrb[0].mxu0
        %590 = vmatprep.mubr.bf16.mxu0 0
        %591 = vmatmul.mubr.bf16.gmra.mrb[0].mxu0 %v463
        %v592 = vpop.f32.mrb[0].mxu0
        %v593 = vadd.f32 0.0, %v592
        %v594 = vpop.f32.mrb[0].mxu0
        %v595 = vpop.f32.mrb[0].mxu0
        %v596 = vadd.f32 0.0, %v595
        %v597 = vpop.f32.mrb[0].mxu0
        %598 = vmatprep.mubr.bf16.mxu0 0
        %599 = vmatmul.mubr.bf16.gmra.mrb[0].mxu0 %v464
        %v600 = vpop.f32.mrb[0].mxu0
        %v601 = vadd.f32 0.0, %v600
        %v602 = vpop.f32.mrb[0].mxu0
        %v603 = vpop.f32.mrb[0].mxu0
        %v604 = vadd.f32 0.0, %v603
        %v605 = vpop.f32.mrb[0].mxu0
        %606 = vmatprep.mubr.bf16.mxu0 0
        %607 = vmatmul.mubr.bf16.gmra.mrb[0].mxu0 %v465
        %v608 = vpop.f32.mrb[0].mxu0
        %v609 = vadd.f32 0.0, %v608
        %v610 = vpop.f32.mrb[0].mxu0
        %v611 = vpop.f32.mrb[0].mxu0
        %v612 = vadd.f32 0.0, %v611
        %v613 = vpop.f32.mrb[0].mxu0
        %614 = vmatprep.mubr.bf16.mxu0 0
        %615 = vmatmul.mubr.bf16.gmra.mrb[0].mxu0 %v466
        %v616 = vpop.f32.mrb[0].mxu0
        %v617 = vadd.f32 0.0, %v616
        %v618 = vpop.f32.mrb[0].mxu0
        %v619 = vpop.f32.mrb[0].mxu0
        %v620 = vadd.f32 0.0, %v619
        %v621 = vpop.f32.mrb[0].mxu0
        %622 = vmatprep.mubr.bf16.mxu0 0
        %623 = vmatmul.mubr.bf16.gmra.mrb[0].mxu0 %v467
        %v624 = vpop.f32.mrb[0].mxu0
        %v625 = vadd.f32 0.0, %v624
        %v626 = vpop.f32.mrb[0].mxu0
        %v627 = vpop.f32.mrb[0].mxu0
        %v628 = vadd.f32 0.0, %v627
        %v629 = vpop.f32.mrb[0].mxu0
        %630 = vmatprep.mubr.bf16.mxu0 0
        %631 = vmatmul.mubr.bf16.gmra.mrb[0].mxu0 %v468
        %v632 = vpop.f32.mrb[0].mxu0
        %v633 = vadd.f32 0.0, %v632
        %v634 = vpop.f32.mrb[0].mxu0
        %v635 = vpop.f32.mrb[0].mxu0
        %v636 = vadd.f32 0.0, %v635
        %v637 = vpop.f32.mrb[0].mxu0
        %638 = vmatprep.mubr.bf16.mxu0 0
        %639 = vmatmul.mubr.bf16.gmra.mrb[0].mxu0 %v469
        %v640 = vpop.f32.mrb[0].mxu0
        %v641 = vadd.f32 0.0, %v640
        %v642 = vpop.f32.mrb[0].mxu0
        %v643 = vpop.f32.mrb[0].mxu0
        %v644 = vadd.f32 0.0, %v643
        %v645 = vpop.f32.mrb[0].mxu0
        %646 = vdwg.mxu0
        %v647 = vadd.f32 %v470, %v585
        %v648 = vadd.f32 %v471, %v588
        %v649 = vadd.f32 %v472, %v593
        %v650 = vadd.f32 %v473, %v596
        %v651 = vadd.f32 %v474, %v601
        %v652 = vadd.f32 %v475, %v604
        %v653 = vadd.f32 %v476, %v609
        %v654 = vadd.f32 %v477, %v612
        %v655 = vadd.f32 %v478, %v617
        %v656 = vadd.f32 %v479, %v620
        %v657 = vadd.f32 %v480, %v625
        %v658 = vadd.f32 %v481, %v628
        %v659 = vadd.f32 %v482, %v633
        %v660 = vadd.f32 %v483, %v636
        %v661 = vadd.f32 %v484, %v641
        %v662 = vadd.f32 %v485, %v644
        %663 = vst [vmem:[#allocation2] sm:$0xff] %v647
        %664 = vst [vmem:[#allocation2 + $0x8] sm:$0xff] %v648
        %665 = vst [vmem:[#allocation2 + $0x10] sm:$0xff] %v649
        %666 = vst [vmem:[#allocation2 + $0x18] sm:$0xff] %v650
        %667 = vst [vmem:[#allocation2 + $0x20] sm:$0xff] %v651
        %668 = vst [vmem:[#allocation2 + $0x28] sm:$0xff] %v652
        %669 = vst [vmem:[#allocation2 + $0x30] sm:$0xff] %v653
        %670 = vst [vmem:[#allocation2 + $0x38] sm:$0xff] %v654
        %671 = vst [vmem:[#allocation2 + $0x40] sm:$0xff] %v655
        %672 = vst [vmem:[#allocation2 + $0x48] sm:$0xff] %v656
        %673 = vst [vmem:[#allocation2 + $0x50] sm:$0xff] %v657
        %674 = vst [vmem:[#allocation2 + $0x58] sm:$0xff] %v658
        %675 = vst [vmem:[#allocation2 + $0x60] sm:$0xff] %v659
        %676 = vst [vmem:[#allocation2 + $0x68] sm:$0xff] %v660
        %677 = vst [vmem:[#allocation2 + $0x70] sm:$0xff] %v661
        %678 = vst [vmem:[#allocation2 + $0x78] sm:$0xff] %v662
        %p679 = scmp.eq.s32.totalorder %s24, 1
        // Predicated region
        $region95: #{_lambda_.1} parent=85 // pred_check
          %p680 = pneg %p679
        $region96: #{_lambda_.1} parent=85 // pred_check_branch
          %682 = sbr.rel (%p680) target = $region98
        $region97: #{_lambda_.1} parent=85 // pred_region
          %v683 = vld [vmem:[#allocation2] sm:$0xff]
          %v684 = vld [vmem:[#allocation2 + $0x8] sm:$0xff]
          %v685 = vld [vmem:[#allocation2 + $0x10] sm:$0xff]
          %v686 = vld [vmem:[#allocation2 + $0x18] sm:$0xff]
          %v687 = vld [vmem:[#allocation2 + $0x20] sm:$0xff]
          %v688 = vld [vmem:[#allocation2 + $0x28] sm:$0xff]
          %v689 = vld [vmem:[#allocation2 + $0x30] sm:$0xff]
          %v690 = vld [vmem:[#allocation2 + $0x38] sm:$0xff]
          %v691 = vld [vmem:[#allocation2 + $0x40] sm:$0xff]
          %v692 = vld [vmem:[#allocation2 + $0x48] sm:$0xff]
          %v693 = vld [vmem:[#allocation2 + $0x50] sm:$0xff]
          %v694 = vld [vmem:[#allocation2 + $0x58] sm:$0xff]
          %v695 = vld [vmem:[#allocation2 + $0x60] sm:$0xff]
          %v696 = vld [vmem:[#allocation2 + $0x68] sm:$0xff]
          %v697 = vld [vmem:[#allocation2 + $0x70] sm:$0xff]
          %v698 = vld [vmem:[#allocation2 + $0x78] sm:$0xff]
          %v699 = vld [vmem:[%s417] sm:$0xff]
          %v700 = vld [vmem:[%s417 + $0x8] sm:$0xff]
          %v701 = vld [vmem:[%s417 + $0x10] sm:$0xff]
          %v702 = vld [vmem:[%s417 + $0x18] sm:$0xff]
          %v703 = vld [vmem:[%s417 + $0x20] sm:$0xff]
          %v704 = vld [vmem:[%s417 + $0x28] sm:$0xff]
          %v705 = vld [vmem:[%s417 + $0x30] sm:$0xff]
          %v706 = vld [vmem:[%s417 + $0x38] sm:$0xff]
          %v707 = vld [vmem:[%s417 + $0x40] sm:$0xff]
          %v708 = vld [vmem:[%s417 + $0x48] sm:$0xff]
          %v709 = vld [vmem:[%s417 + $0x50] sm:$0xff]
          %v710 = vld [vmem:[%s417 + $0x58] sm:$0xff]
          %v711 = vld [vmem:[%s417 + $0x60] sm:$0xff]
          %v712 = vld [vmem:[%s417 + $0x68] sm:$0xff]
          %v713 = vld [vmem:[%s417 + $0x70] sm:$0xff]
          %v714 = vld [vmem:[%s417 + $0x78] sm:$0xff]
          %716 = vset.pattern.permute.xlu0 0
          %717 = vperm.xlu0 %716, %v699
          %v718 = vpop.permute.xlu0 %717
          %721 = vset.pattern.permute.xlu0 0
          %722 = vperm.xlu0 %721, %v700
          %v723 = vpop.permute.xlu0 %722
          %726 = vset.pattern.permute.xlu0 0
          %727 = vperm.xlu0 %726, %v701
          %v728 = vpop.permute.xlu0 %727
          %731 = vset.pattern.permute.xlu0 0
          %732 = vperm.xlu0 %731, %v702
          %v733 = vpop.permute.xlu0 %732
          %736 = vset.pattern.permute.xlu0 0
          %737 = vperm.xlu0 %736, %v703
          %v738 = vpop.permute.xlu0 %737
          %741 = vset.pattern.permute.xlu0 0
          %742 = vperm.xlu0 %741, %v704
          %v743 = vpop.permute.xlu0 %742
          %746 = vset.pattern.permute.xlu0 0
          %747 = vperm.xlu0 %746, %v705
          %v748 = vpop.permute.xlu0 %747
          %751 = vset.pattern.permute.xlu0 0
          %752 = vperm.xlu0 %751, %v706
          %v753 = vpop.permute.xlu0 %752
          %756 = vset.pattern.permute.xlu0 0
          %757 = vperm.xlu0 %756, %v707
          %v758 = vpop.permute.xlu0 %757
          %761 = vset.pattern.permute.xlu0 0
          %762 = vperm.xlu0 %761, %v708
          %v763 = vpop.permute.xlu0 %762
          %766 = vset.pattern.permute.xlu0 0
          %767 = vperm.xlu0 %766, %v709
          %v768 = vpop.permute.xlu0 %767
          %771 = vset.pattern.permute.xlu0 0
          %772 = vperm.xlu0 %771, %v710
          %v773 = vpop.permute.xlu0 %772
          %776 = vset.pattern.permute.xlu0 0
          %777 = vperm.xlu0 %776, %v711
          %v778 = vpop.permute.xlu0 %777
          %781 = vset.pattern.permute.xlu0 0
          %782 = vperm.xlu0 %781, %v712
          %v783 = vpop.permute.xlu0 %782
          %786 = vset.pattern.permute.xlu0 0
          %787 = vperm.xlu0 %786, %v713
          %v788 = vpop.permute.xlu0 %787
          %791 = vset.pattern.permute.xlu0 0
          %792 = vperm.xlu0 %791, %v714
          %v793 = vpop.permute.xlu0 %792
          %v795 = vmul.f32 %v683, %v718
          %v796 = vmul.f32 %v684, %v723
          %v797 = vmul.f32 %v685, %v728
          %v798 = vmul.f32 %v686, %v733
          %v799 = vmul.f32 %v687, %v738
          %v800 = vmul.f32 %v688, %v743
          %v801 = vmul.f32 %v689, %v748
          %v802 = vmul.f32 %v690, %v753
          %v803 = vmul.f32 %v691, %v758
          %v804 = vmul.f32 %v692, %v763
          %v805 = vmul.f32 %v693, %v768
          %v806 = vmul.f32 %v694, %v773
          %v807 = vmul.f32 %v695, %v778
          %v808 = vmul.f32 %v696, %v783
          %v809 = vmul.f32 %v697, %v788
          %v810 = vmul.f32 %v698, %v793
          %v811 = vpack.c.bf16 %v796, %v795
          %v812 = vpack.c.bf16 %v798, %v797
          %v813 = vpack.c.bf16 %v800, %v799
          %v814 = vpack.c.bf16 %v802, %v801
          %v815 = vpack.c.bf16 %v804, %v803
          %v816 = vpack.c.bf16 %v806, %v805
          %v817 = vpack.c.bf16 %v808, %v807
          %v818 = vpack.c.bf16 %v810, %v809
          %v819 = vld [vmem:[%s4] sm:$0xf]
          %v820 = vld [vmem:[%s4 + $0x4] sm:$0xf]
          %v821 = vld [vmem:[%s4 + $0x8] sm:$0xf]
          %v822 = vld [vmem:[%s4 + $0xc] sm:$0xf]
          %v823 = vld [vmem:[%s4 + $0x10] sm:$0xf]
          %v824 = vld [vmem:[%s4 + $0x14] sm:$0xf]
          %v825 = vld [vmem:[%s4 + $0x18] sm:$0xf]
          %v826 = vld [vmem:[%s4 + $0x1c] sm:$0xf]
          %v827 = vld [vmem:[%s4 + $0x20] sm:$0xf]
          %v828 = vld [vmem:[%s4 + $0x24] sm:$0xf]
          %v829 = vld [vmem:[%s4 + $0x28] sm:$0xf]
          %v830 = vld [vmem:[%s4 + $0x2c] sm:$0xf]
          %v831 = vld [vmem:[%s4 + $0x30] sm:$0xf]
          %v832 = vld [vmem:[%s4 + $0x34] sm:$0xf]
          %v833 = vld [vmem:[%s4 + $0x38] sm:$0xf]
          %v834 = vld [vmem:[%s4 + $0x3c] sm:$0xf]
          %v835 = vld [vmem:[%s5] sm:$0x1]
          %v837 = vlaneseq
          %v838 = vshrl.u32 %v837, 7
          %v839 = vsub.s32 0, %v838
          %v840 = vrot.slane %v835, %v839
          %v858 = vunpack.c.l.b16 %v819
          %v859 = vunpack.c.l.b16 %v820
          %v860 = vunpack.c.l.b16 %v821
          %v861 = vunpack.c.l.b16 %v822
          %v862 = vunpack.c.l.b16 %v823
          %v863 = vunpack.c.l.b16 %v824
          %v864 = vunpack.c.l.b16 %v825
          %v865 = vunpack.c.l.b16 %v826
          %v866 = vunpack.c.l.b16 %v827
          %v867 = vunpack.c.l.b16 %v828
          %v868 = vunpack.c.l.b16 %v829
          %v869 = vunpack.c.l.b16 %v830
          %v870 = vunpack.c.l.b16 %v831
          %v871 = vunpack.c.l.b16 %v832
          %v872 = vunpack.c.l.b16 %v833
          %v873 = vunpack.c.l.b16 %v834
          %v874 = vpack.c.b16 %v859, %v858
          %v875 = vpack.c.b16 %v861, %v860
          %v876 = vpack.c.b16 %v863, %v862
          %v877 = vpack.c.b16 %v865, %v864
          %v878 = vpack.c.b16 %v867, %v866
          %v879 = vpack.c.b16 %v869, %v868
          %v880 = vpack.c.b16 %v871, %v870
          %v881 = vpack.c.b16 %v873, %v872
          %890 = vmatprep.subr.bf16.mxu0 0
          %891 = vmatpush1.bf16.msra.mxu0 %v874
          %892 = vmatprep.subr.bf16.mxu0 0
          %893 = vmatpush1.bf16.msra.mxu0 %v875
          %894 = vmatprep.subr.bf16.mxu0 0
          %895 = vmatpush1.bf16.msra.mxu0 %v876
          %896 = vmatprep.subr.bf16.mxu0 0
          %897 = vmatpush1.bf16.msra.mxu0 %v877
          %898 = vmatprep.subr.bf16.mxu0 0
          %899 = vmatpush1.bf16.msra.mxu0 %v878
          %900 = vmatprep.subr.bf16.mxu0 0
          %901 = vmatpush1.bf16.msra.mxu0 %v879
          %902 = vmatprep.subr.bf16.mxu0 0
          %903 = vmatpush1.bf16.msra.mxu0 %v880
          %904 = vmatprep.subr.bf16.mxu0 0
          %905 = vmatpush1.bf16.msra.mxu0 %v881
          %906 = vmatprep.subr.bf16.mxu0 0
          %907 = vmatpush1.bf16.msra.mxu0 0
          %908 = vmatprep.subr.bf16.mxu0 0
          %909 = vmatpush1.bf16.msra.mxu0 0
          %910 = vmatprep.subr.bf16.mxu0 0
          %911 = vmatpush1.bf16.msra.mxu0 0
          %912 = vmatprep.subr.bf16.mxu0 0
          %913 = vmatpush1.bf16.msra.mxu0 0
          %914 = vmatprep.subr.bf16.mxu0 0
          %915 = vmatpush1.bf16.msra.mxu0 0
          %916 = vmatprep.subr.bf16.mxu0 0
          %917 = vmatpush1.bf16.msra.mxu0 0
          %918 = vmatprep.subr.bf16.mxu0 0
          %919 = vmatpush1.bf16.msra.mxu0 0
          %920 = vmatprep.subr.bf16.mxu0 0
          %921 = vmatpush1.bf16.msra.mxu0 0
          %922 = vmatprep.mubr.bf16.mxu0 0
          %923 = vmatmul.mubr.bf16.gmra.mrb[0].mxu0 %v811
          %v924 = vpop.f32.mrb[0].mxu0
          %v925 = vadd.f32 %v840, %v924
          %v926 = vpop.f32.mrb[0].mxu0
          %v927 = vpop.f32.mrb[0].mxu0
          %v928 = vadd.f32 %v840, %v927
          %v929 = vpop.f32.mrb[0].mxu0
          %930 = vmatprep.mubr.bf16.mxu0 0
          %931 = vmatmul.mubr.bf16.gmra.mrb[0].mxu0 %v812
          %v932 = vpop.f32.mrb[0].mxu0
          %v933 = vadd.f32 %v840, %v932
          %v934 = vpop.f32.mrb[0].mxu0
          %v935 = vpop.f32.mrb[0].mxu0
          %v936 = vadd.f32 %v840, %v935
          %v937 = vpop.f32.mrb[0].mxu0
          %938 = vmatprep.mubr.bf16.mxu0 0
          %939 = vmatmul.mubr.bf16.gmra.mrb[0].mxu0 %v813
          %v940 = vpop.f32.mrb[0].mxu0
          %v941 = vadd.f32 %v840, %v940
          %v942 = vpop.f32.mrb[0].mxu0
          %v943 = vpop.f32.mrb[0].mxu0
          %v944 = vadd.f32 %v840, %v943
          %v945 = vpop.f32.mrb[0].mxu0
          %946 = vmatprep.mubr.bf16.mxu0 0
          %947 = vmatmul.mubr.bf16.gmra.mrb[0].mxu0 %v814
          %v948 = vpop.f32.mrb[0].mxu0
          %v949 = vadd.f32 %v840, %v948
          %v950 = vpop.f32.mrb[0].mxu0
          %v951 = vpop.f32.mrb[0].mxu0
          %v952 = vadd.f32 %v840, %v951
          %v953 = vpop.f32.mrb[0].mxu0
          %954 = vmatprep.mubr.bf16.mxu0 0
          %955 = vmatmul.mubr.bf16.gmra.mrb[0].mxu0 %v815
          %v956 = vpop.f32.mrb[0].mxu0
          %v957 = vadd.f32 %v840, %v956
          %v958 = vpop.f32.mrb[0].mxu0
          %v959 = vpop.f32.mrb[0].mxu0
          %v960 = vadd.f32 %v840, %v959
          %v961 = vpop.f32.mrb[0].mxu0
          %962 = vmatprep.mubr.bf16.mxu0 0
          %963 = vmatmul.mubr.bf16.gmra.mrb[0].mxu0 %v816
          %v964 = vpop.f32.mrb[0].mxu0
          %v965 = vadd.f32 %v840, %v964
          %v966 = vpop.f32.mrb[0].mxu0
          %v967 = vpop.f32.mrb[0].mxu0
          %v968 = vadd.f32 %v840, %v967
          %v969 = vpop.f32.mrb[0].mxu0
          %970 = vmatprep.mubr.bf16.mxu0 0
          %971 = vmatmul.mubr.bf16.gmra.mrb[0].mxu0 %v817
          %v972 = vpop.f32.mrb[0].mxu0
          %v973 = vadd.f32 %v840, %v972
          %v974 = vpop.f32.mrb[0].mxu0
          %v975 = vpop.f32.mrb[0].mxu0
          %v976 = vadd.f32 %v840, %v975
          %v977 = vpop.f32.mrb[0].mxu0
          %978 = vmatprep.mubr.bf16.mxu0 0
          %979 = vmatmul.mubr.bf16.gmra.mrb[0].mxu0 %v818
          %v980 = vpop.f32.mrb[0].mxu0
          %v981 = vadd.f32 %v840, %v980
          %v982 = vpop.f32.mrb[0].mxu0
          %v983 = vpop.f32.mrb[0].mxu0
          %v984 = vadd.f32 %v840, %v983
          %v985 = vpop.f32.mrb[0].mxu0
          %986 = vdwg.mxu0
          %v987 = vmax.f32 %v925, 0.0
          %v988 = vmax.f32 %v928, 0.0
          %v989 = vmax.f32 %v933, 0.0
          %v990 = vmax.f32 %v936, 0.0
          %v991 = vmax.f32 %v941, 0.0
          %v992 = vmax.f32 %v944, 0.0
          %v993 = vmax.f32 %v949, 0.0
          %v994 = vmax.f32 %v952, 0.0
          %v995 = vmax.f32 %v957, 0.0
          %v996 = vmax.f32 %v960, 0.0
          %v997 = vmax.f32 %v965, 0.0
          %v998 = vmax.f32 %v968, 0.0
          %v999 = vmax.f32 %v973, 0.0
          %v1000 = vmax.f32 %v976, 0.0
          %v1001 = vmax.f32 %v981, 0.0
          %v1002 = vmax.f32 %v984, 0.0
          %v1003 = vld [vmem:[%s429] sm:$0xf]
          %v1004 = vld [vmem:[%s429 + $0x4] sm:$0xf]
          %v1005 = vld [vmem:[%s429 + $0x8] sm:$0xf]
          %v1006 = vld [vmem:[%s429 + $0xc] sm:$0xf]
          %v1007 = vld [vmem:[%s429 + $0x10] sm:$0xf]
          %v1008 = vld [vmem:[%s429 + $0x14] sm:$0xf]
          %v1009 = vld [vmem:[%s429 + $0x18] sm:$0xf]
          %v1010 = vld [vmem:[%s429 + $0x1c] sm:$0xf]
          %v1011 = vld [vmem:[%s429 + $0x20] sm:$0xf]
          %v1012 = vld [vmem:[%s429 + $0x24] sm:$0xf]
          %v1013 = vld [vmem:[%s429 + $0x28] sm:$0xf]
          %v1014 = vld [vmem:[%s429 + $0x2c] sm:$0xf]
          %v1015 = vld [vmem:[%s429 + $0x30] sm:$0xf]
          %v1016 = vld [vmem:[%s429 + $0x34] sm:$0xf]
          %v1017 = vld [vmem:[%s429 + $0x38] sm:$0xf]
          %v1018 = vld [vmem:[%s429 + $0x3c] sm:$0xf]
          %v1019 = vld [vmem:[%s6] sm:$0xf]
          %v1020 = vld [vmem:[%s6 + $0x4] sm:$0xf]
          %v1021 = vld [vmem:[%s6 + $0x8] sm:$0xf]
          %v1022 = vld [vmem:[%s6 + $0xc] sm:$0xf]
          %v1023 = vld [vmem:[%s6 + $0x10] sm:$0xf]
          %v1024 = vld [vmem:[%s6 + $0x14] sm:$0xf]
          %v1025 = vld [vmem:[%s6 + $0x18] sm:$0xf]
          %v1026 = vld [vmem:[%s6 + $0x1c] sm:$0xf]
          %v1027 = vld [vmem:[%s6 + $0x20] sm:$0xf]
          %v1028 = vld [vmem:[%s6 + $0x24] sm:$0xf]
          %v1029 = vld [vmem:[%s6 + $0x28] sm:$0xf]
          %v1030 = vld [vmem:[%s6 + $0x2c] sm:$0xf]
          %v1031 = vld [vmem:[%s6 + $0x30] sm:$0xf]
          %v1032 = vld [vmem:[%s6 + $0x34] sm:$0xf]
          %v1033 = vld [vmem:[%s6 + $0x38] sm:$0xf]
          %v1034 = vld [vmem:[%s6 + $0x3c] sm:$0xf]
          %v1035 = vld [vmem:[%s7] sm:$0x1]
          %v1037 = vlaneseq
          %v1038 = vshrl.u32 %v1037, 7
          %v1039 = vsub.s32 0, %v1038
          %v1040 = vrot.slane %v1035, %v1039
          %v1058 = vunpack.c.l.b16 %v1003
          %v1059 = vunpack.c.l.b16 %v1004
          %v1060 = vunpack.c.l.b16 %v1005
          %v1061 = vunpack.c.l.b16 %v1006
          %v1062 = vunpack.c.l.b16 %v1007
          %v1063 = vunpack.c.l.b16 %v1008
          %v1064 = vunpack.c.l.b16 %v1009
          %v1065 = vunpack.c.l.b16 %v1010
          %v1066 = vunpack.c.l.b16 %v1011
          %v1067 = vunpack.c.l.b16 %v1012
          %v1068 = vunpack.c.l.b16 %v1013
          %v1069 = vunpack.c.l.b16 %v1014
          %v1070 = vunpack.c.l.b16 %v1015
          %v1071 = vunpack.c.l.b16 %v1016
          %v1072 = vunpack.c.l.b16 %v1017
          %v1073 = vunpack.c.l.b16 %v1018
          %v1074 = vpack.c.b16 %v1059, %v1058
          %v1075 = vpack.c.b16 %v1061, %v1060
          %v1076 = vpack.c.b16 %v1063, %v1062
          %v1077 = vpack.c.b16 %v1065, %v1064
          %v1078 = vpack.c.b16 %v1067, %v1066
          %v1079 = vpack.c.b16 %v1069, %v1068
          %v1080 = vpack.c.b16 %v1071, %v1070
          %v1081 = vpack.c.b16 %v1073, %v1072
          %v1106 = vunpack.c.l.b16 %v1019
          %v1107 = vunpack.c.l.b16 %v1020
          %v1108 = vunpack.c.l.b16 %v1021
          %v1109 = vunpack.c.l.b16 %v1022
          %v1110 = vunpack.c.l.b16 %v1023
          %v1111 = vunpack.c.l.b16 %v1024
          %v1112 = vunpack.c.l.b16 %v1025
          %v1113 = vunpack.c.l.b16 %v1026
          %v1114 = vunpack.c.l.b16 %v1027
          %v1115 = vunpack.c.l.b16 %v1028
          %v1116 = vunpack.c.l.b16 %v1029
          %v1117 = vunpack.c.l.b16 %v1030
          %v1118 = vunpack.c.l.b16 %v1031
          %v1119 = vunpack.c.l.b16 %v1032
          %v1120 = vunpack.c.l.b16 %v1033
          %v1121 = vunpack.c.l.b16 %v1034
          %v1122 = vpack.c.b16 %v1107, %v1106
          %v1123 = vpack.c.b16 %v1109, %v1108
          %v1124 = vpack.c.b16 %v1111, %v1110
          %v1125 = vpack.c.b16 %v1113, %v1112
          %v1126 = vpack.c.b16 %v1115, %v1114
          %v1127 = vpack.c.b16 %v1117, %v1116
          %v1128 = vpack.c.b16 %v1119, %v1118
          %v1129 = vpack.c.b16 %v1121, %v1120
          %1138 = vmatprep.subr.bf16.mxu0 0
          %1139 = vmatpush1.bf16.msra.mxu0 %v1122
          %1140 = vmatprep.subr.bf16.mxu0 0
          %1141 = vmatpush1.bf16.msra.mxu0 %v1123
          %1142 = vmatprep.subr.bf16.mxu0 0
          %1143 = vmatpush1.bf16.msra.mxu0 %v1124
          %1144 = vmatprep.subr.bf16.mxu0 0
          %1145 = vmatpush1.bf16.msra.mxu0 %v1125
          %1146 = vmatprep.subr.bf16.mxu0 0
          %1147 = vmatpush1.bf16.msra.mxu0 %v1126
          %1148 = vmatprep.subr.bf16.mxu0 0
          %1149 = vmatpush1.bf16.msra.mxu0 %v1127
          %1150 = vmatprep.subr.bf16.mxu0 0
          %1151 = vmatpush1.bf16.msra.mxu0 %v1128
          %1152 = vmatprep.subr.bf16.mxu0 0
          %1153 = vmatpush1.bf16.msra.mxu0 %v1129
          %1154 = vmatprep.subr.bf16.mxu0 0
          %1155 = vmatpush1.bf16.msra.mxu0 0
          %1156 = vmatprep.subr.bf16.mxu0 0
          %1157 = vmatpush1.bf16.msra.mxu0 0
          %1158 = vmatprep.subr.bf16.mxu0 0
          %1159 = vmatpush1.bf16.msra.mxu0 0
          %1160 = vmatprep.subr.bf16.mxu0 0
          %1161 = vmatpush1.bf16.msra.mxu0 0
          %1162 = vmatprep.subr.bf16.mxu0 0
          %1163 = vmatpush1.bf16.msra.mxu0 0
          %1164 = vmatprep.subr.bf16.mxu0 0
          %1165 = vmatpush1.bf16.msra.mxu0 0
          %1166 = vmatprep.subr.bf16.mxu0 0
          %1167 = vmatpush1.bf16.msra.mxu0 0
          %1168 = vmatprep.subr.bf16.mxu0 0
          %1169 = vmatpush1.bf16.msra.mxu0 0
          %1170 = vmatprep.mubr.bf16.mxu0 0
          %1171 = vmatmul.mubr.bf16.gmra.mrb[0].mxu0 %v1074
          %v1172 = vpop.f32.mrb[0].mxu0
          %v1173 = vadd.f32 %v1040, %v1172
          %v1174 = vpop.f32.mrb[0].mxu0
          %v1175 = vpop.f32.mrb[0].mxu0
          %v1176 = vadd.f32 %v1040, %v1175
          %v1177 = vpop.f32.mrb[0].mxu0
          %1178 = vmatprep.mubr.bf16.mxu0 0
          %1179 = vmatmul.mubr.bf16.gmra.mrb[0].mxu0 %v1075
          %v1180 = vpop.f32.mrb[0].mxu0
          %v1181 = vadd.f32 %v1040, %v1180
          %v1182 = vpop.f32.mrb[0].mxu0
          %v1183 = vpop.f32.mrb[0].mxu0
          %v1184 = vadd.f32 %v1040, %v1183
          %v1185 = vpop.f32.mrb[0].mxu0
          %1186 = vmatprep.mubr.bf16.mxu0 0
          %1187 = vmatmul.mubr.bf16.gmra.mrb[0].mxu0 %v1076
          %v1188 = vpop.f32.mrb[0].mxu0
          %v1189 = vadd.f32 %v1040, %v1188
          %v1190 = vpop.f32.mrb[0].mxu0
          %v1191 = vpop.f32.mrb[0].mxu0
          %v1192 = vadd.f32 %v1040, %v1191
          %v1193 = vpop.f32.mrb[0].mxu0
          %1194 = vmatprep.mubr.bf16.mxu0 0
          %1195 = vmatmul.mubr.bf16.gmra.mrb[0].mxu0 %v1077
          %v1196 = vpop.f32.mrb[0].mxu0
          %v1197 = vadd.f32 %v1040, %v1196
          %v1198 = vpop.f32.mrb[0].mxu0
          %v1199 = vpop.f32.mrb[0].mxu0
          %v1200 = vadd.f32 %v1040, %v1199
          %v1201 = vpop.f32.mrb[0].mxu0
          %1202 = vmatprep.mubr.bf16.mxu0 0
          %1203 = vmatmul.mubr.bf16.gmra.mrb[0].mxu0 %v1078
          %v1204 = vpop.f32.mrb[0].mxu0
          %v1205 = vadd.f32 %v1040, %v1204
          %v1206 = vpop.f32.mrb[0].mxu0
          %v1207 = vpop.f32.mrb[0].mxu0
          %v1208 = vadd.f32 %v1040, %v1207
          %v1209 = vpop.f32.mrb[0].mxu0
          %1210 = vmatprep.mubr.bf16.mxu0 0
          %1211 = vmatmul.mubr.bf16.gmra.mrb[0].mxu0 %v1079
          %v1212 = vpop.f32.mrb[0].mxu0
          %v1213 = vadd.f32 %v1040, %v1212
          %v1214 = vpop.f32.mrb[0].mxu0
          %v1215 = vpop.f32.mrb[0].mxu0
          %v1216 = vadd.f32 %v1040, %v1215
          %v1217 = vpop.f32.mrb[0].mxu0
          %1218 = vmatprep.mubr.bf16.mxu0 0
          %1219 = vmatmul.mubr.bf16.gmra.mrb[0].mxu0 %v1080
          %v1220 = vpop.f32.mrb[0].mxu0
          %v1221 = vadd.f32 %v1040, %v1220
          %v1222 = vpop.f32.mrb[0].mxu0
          %v1223 = vpop.f32.mrb[0].mxu0
          %v1224 = vadd.f32 %v1040, %v1223
          %v1225 = vpop.f32.mrb[0].mxu0
          %1226 = vmatprep.mubr.bf16.mxu0 0
          %1227 = vmatmul.mubr.bf16.gmra.mrb[0].mxu0 %v1081
          %v1228 = vpop.f32.mrb[0].mxu0
          %v1229 = vadd.f32 %v1040, %v1228
          %v1230 = vpop.f32.mrb[0].mxu0
          %v1231 = vpop.f32.mrb[0].mxu0
          %v1232 = vadd.f32 %v1040, %v1231
          %v1233 = vpop.f32.mrb[0].mxu0
          %1234 = vdwg.mxu0
          %v1235 = vmax.f32 %v1173, 0.0
          %v1236 = vmax.f32 %v1176, 0.0
          %v1237 = vmax.f32 %v1181, 0.0
          %v1238 = vmax.f32 %v1184, 0.0
          %v1239 = vmax.f32 %v1189, 0.0
          %v1240 = vmax.f32 %v1192, 0.0
          %v1241 = vmax.f32 %v1197, 0.0
          %v1242 = vmax.f32 %v1200, 0.0
          %v1243 = vmax.f32 %v1205, 0.0
          %v1244 = vmax.f32 %v1208, 0.0
          %v1245 = vmax.f32 %v1213, 0.0
          %v1246 = vmax.f32 %v1216, 0.0
          %v1247 = vmax.f32 %v1221, 0.0
          %v1248 = vmax.f32 %v1224, 0.0
          %v1249 = vmax.f32 %v1229, 0.0
          %v1250 = vmax.f32 %v1232, 0.0
          %v1251 = vadd.f32 %v987, %v1235
          %v1252 = vadd.f32 %v988, %v1236
          %v1253 = vadd.f32 %v989, %v1237
          %v1254 = vadd.f32 %v990, %v1238
          %v1255 = vadd.f32 %v991, %v1239
          %v1256 = vadd.f32 %v992, %v1240
          %v1257 = vadd.f32 %v993, %v1241
          %v1258 = vadd.f32 %v994, %v1242
          %v1259 = vadd.f32 %v995, %v1243
          %v1260 = vadd.f32 %v996, %v1244
          %v1261 = vadd.f32 %v997, %v1245
          %v1262 = vadd.f32 %v998, %v1246
          %v1263 = vadd.f32 %v999, %v1247
          %v1264 = vadd.f32 %v1000, %v1248
          %v1265 = vadd.f32 %v1001, %v1249
          %v1266 = vadd.f32 %v1002, %v1250
          %1267 = vst [vmem:[%s435] sm:$0xff] %v1251
          %1268 = vst [vmem:[%s435 + $0x8] sm:$0xff] %v1252
          %1269 = vst [vmem:[%s435 + $0x10] sm:$0xff] %v1253
          %1270 = vst [vmem:[%s435 + $0x18] sm:$0xff] %v1254
          %1271 = vst [vmem:[%s435 + $0x20] sm:$0xff] %v1255
          %1272 = vst [vmem:[%s435 + $0x28] sm:$0xff] %v1256
          %1273 = vst [vmem:[%s435 + $0x30] sm:$0xff] %v1257
          %1274 = vst [vmem:[%s435 + $0x38] sm:$0xff] %v1258
          %1275 = vst [vmem:[%s435 + $0x40] sm:$0xff] %v1259
          %1276 = vst [vmem:[%s435 + $0x48] sm:$0xff] %v1260
          %1277 = vst [vmem:[%s435 + $0x50] sm:$0xff] %v1261
          %1278 = vst [vmem:[%s435 + $0x58] sm:$0xff] %v1262
          %1279 = vst [vmem:[%s435 + $0x60] sm:$0xff] %v1263
          %1280 = vst [vmem:[%s435 + $0x68] sm:$0xff] %v1264
          %1281 = vst [vmem:[%s435 + $0x70] sm:$0xff] %v1265
          %1282 = vst [vmem:[%s435 + $0x78] sm:$0xff] %v1266
        $region98: #{_lambda_.1} parent=85 // pred_fallthru
          _
        %s1283 = smul.u32 16, %s23
        %p1284 = scmp.lt.s32.totalorder %s1283, 31
        %s1285 = scalar_select %p1284, %s1283, 31
        %s1286 = smul.addr %s1285, 8
        %s1287 = scalar_lea.vmem %s8, %s1286
        // Predicated region
        $region99: #{_lambda_.1} parent=85 // pred_check
          %p1288 = pneg %p239
        $region100: #{_lambda_.1} parent=85 // pred_check_branch
          %1290 = sbr.rel (%p1288) target = $region102
        $region101: #{_lambda_.1} parent=85 // pred_region
          %s1291 = smul.u32 16, %s23
        $region102: #{_lambda_.1} parent=85 // pred_fallthru
          _
      $region86: #{_lambda_.1} parent=5 // pred_fallthru
        _
      %p1292 = scmp.le.s32.totalorder 2, %s14
      // Predicated region
      $region103: #{_lambda_.1} parent=5 // pred_check
        %p1293 = pneg %p1292
      $region104: #{_lambda_.1} parent=5 // pred_check_branch
        %1295 = sbr.rel (%p1293) target = $region106
      $region105: #{_lambda_.1} parent=5 // pred_region
        %s1296 = ssub.s32 %s14, 2
        // Predicated region
        $region107: #{_lambda_.1} parent=105 // pred_check
          %p1297 = pneg %p245
        $region108: #{_lambda_.1} parent=105 // pred_check_branch
          %1299 = sbr.rel (%p1297) target = $region110
        $region109: #{_lambda_.1} parent=105 // pred_region
          %s1300 = smul.u32 16, %s25
          %p1301 = scmp.lt.s32.totalorder %s1300, 31
          %s1302 = scalar_select %p1301, %s1300, 31
          %s1303 = smul.addr %s1302, 8
          %s1304 = scalar_lea.vmem %s8, %s1303
        $region110: #{_lambda_.1} parent=105 // pred_fallthru
          _
      $region106: #{_lambda_.1} parent=5 // pred_fallthru
        _
    $region6: #{_lambda_.1} parent=1 // loop_footer
      %s18 = sadd.s32 1, %s14
    $region7: #{_lambda_.1} parent=1 // loop_footer_branch
      %13 = sbr.rel target = $region3
    $region8: #{_lambda_.1} parent=1 // loop_exit
      _

</llo_original>
